<compile_context>
chip_gen: v6e
topology: v6e:2x2x1
jax: 0.10.0
libtpu: 0.0.40
codegen_flags: <defaults>
</compile_context>

<pallas_src>
import jax
import jax.numpy as jnp
from jax.experimental import pallas as pl
from jax.experimental.pallas import tpu as pltpu

EPS = 1e-5

TARGET_ROWS = 1024        # rows (TB*N) per grid step; >=512 reaches ~85% HBM roofline
MIN_SPLIT_ROWS = 512      # only split a single-step slab if each half keeps this many
SINGLE_BUFFER_PARAM_C = 1024


def local_propagation_kernel(x_ref, wconv_ref, wmix_ref, bmix_ref,
                             gamma_ref, beta_ref, o_ref):
    tb, n, c = x_ref.shape
    r = tb * n
    f32 = jnp.float32

    x3 = x_ref[...].astype(f32)                                    # (tb, n, c)
    # Position within each sequence: iota over dimension=1 of the 3-D view,
    # so no `% n` modulo is ever computed.
    pos3 = jax.lax.broadcasted_iota(jnp.int32, (tb, n, c), 1)

    # Flatten (tb, n, c) -> (tb*n, c); a layout no-op when n % 8 == 0.
    x = x3.reshape(r, c)
    pos = pos3.reshape(r, c)

    # Depthwise conv1d along N (kernel=3, zero pad=1, cross-correlation):
    #   out[n] = w0*x[n-1] + w1*x[n] + w2*x[n+1]   (conv bias folded into bmix)
    w0 = wconv_ref[0:1, :]   # (1, C)
    w1 = wconv_ref[1:2, :]
    w2 = wconv_ref[2:3, :]

    # Shifts along the flattened row axis via XLU rolls; rows that would wrap
    # across a batch boundary (== the zero-padded sequence ends) are masked,
    # which makes the flattened roll exactly a per-batch shift.
    x_prev = jnp.where(pos == 0, 0.0, pltpu.roll(x, 1, axis=0))
    x_next = jnp.where(pos == n - 1, 0.0, pltpu.roll(x, r - 1, axis=0))
    conv = x_prev * w0 + x * w1 + x_next * w2                       # (R, C)
    # TODO(synk): if a bundle dump shows this VALU-bound, fold each tap into
    # the mixer (W_k = diag(tap_k) @ W^T) and use three MXU matmuls instead.

    # Channel mixer: one big lane-dense (R, C) @ (C, C) MXU matmul.  wmix_ref
    # holds W^T; bmix_ref already contains the conv bias folded through W^T.
    mixed = jnp.dot(conv, wmix_ref[...],
                    preferred_element_type=f32) + bmix_ref[...]

    # LayerNorm over C (eps = 1e-5), one-pass statistics: both lane reductions
    # read the same operand, var = E[x^2] - mean^2; rsqrt stays on the EUP.
    inv_c = 1.0 / c
    s1 = jnp.sum(mixed, axis=-1, keepdims=True)
    s2 = jnp.sum(mixed * mixed, axis=-1, keepdims=True)
    mean = s1 * inv_c
    var = s2 * inv_c - mean * mean
    out = ((mixed - mean) * jax.lax.rsqrt(var + EPS)
           * gamma_ref[...] + beta_ref[...])

    o_ref[...] = out.reshape(tb, n, c).astype(o_ref.dtype)


def _choose_tb(B, N):
    """Rows-per-step driven tile pick: ~TARGET_ROWS rows per grid step."""
    tb = max(1, min(B, TARGET_ROWS // max(N, 1)))
    if tb >= B and B >= 2 and (B * N) // 2 >= MIN_SPLIT_ROWS:
        # Big enough to split without dropping below the per-step amortization
        # point -> give 2-TensorCore chips (v7x / megacore) a second grid step.
        tb = pl.cdiv(B, 2)
    return tb


def local_propagation(x, w_conv, b_conv, w_mix, b_mix, gamma, beta):
    """x: (B, N, C). Returns (B, N, C)."""
    B, N, C = x.shape
    tb = _choose_tb(B, N)
    grid = pl.cdiv(B, tb)
    b_pad = grid * tb
    if b_pad != B:
        # Pad the batch so the grid tiles evenly; padded rows are sliced off.
        x = jnp.pad(x, ((0, b_pad - B), (0, 0), (0, 0)))

    f32 = jnp.float32
    # Kernel-friendly parameter layouts.
    w_conv_k = w_conv.reshape(C, 3).T.astype(f32)          # (3, C): tap -> per-channel weight
    w_mix_t = w_mix.T.astype(f32)                          # (C_in, C_out): y = x @ W^T
    # Fold the conv bias through the linear mixer:
    #   (x + b_conv) @ W^T + b_mix = x @ W^T + (b_conv @ W^T + b_mix).
    b_fused = (b_conv.reshape(1, C).astype(f32) @ w_mix_t
               + b_mix.reshape(1, C).astype(f32))          # (1, C)
    gamma_k = gamma.reshape(1, C).astype(f32)
    beta_k = beta.reshape(1, C).astype(f32)
    # TODO(synk): for bf16 deployments cast conv/w_mix_t to bf16 for the MXU
    # matmul (keep f32 accumulation); needs relaxed numerics tolerance.

    # Grid-invariant parameters: single-buffer them once the (C, C) mixer
    # weight is large enough for its double buffer to matter (v7x: 64 MiB).
    single_buffer = C >= SINGLE_BUFFER_PARAM_C

    def rep(shape):
        if single_buffer:
            return pl.BlockSpec(shape, lambda b: (0, 0),
                                pipeline_mode=pl.Buffered(1))
        return pl.BlockSpec(shape, lambda b: (0, 0))

    # Explicit VMEM budget: double-buffered x/out slabs + parameters, floored
    # at 32 MiB (also lifts v5e's 16 MiB default for the enlarged tiles) and
    # capped at v7x's 64 MiB physical VMEM.
    itemsize = jnp.dtype(x.dtype).itemsize
    slab_bytes = tb * N * C * itemsize
    param_bytes = (C * C + 6 * C) * 4 * (1 if single_buffer else 2)
    vmem_limit = int(min(max(4 * slab_bytes + param_bytes + (8 << 20),
                             32 << 20), 64 << 20))

    out = pl.pallas_call(
        local_propagation_kernel,
        out_shape=jax.ShapeDtypeStruct((b_pad, N, C), x.dtype),
        grid_spec=pltpu.PrefetchScalarGridSpec(
            num_scalar_prefetch=0,
            grid=(grid,),
            in_specs=[
                pl.BlockSpec((tb, N, C), lambda b: (b, 0, 0)),  # x slab
                rep((3, C)),    # conv taps
                rep((C, C)),    # mixer W^T
                rep((1, C)),    # fused (conv+linear) bias
                rep((1, C)),    # layernorm gamma
                rep((1, C)),    # layernorm beta
            ],
            out_specs=pl.BlockSpec((tb, N, C), lambda b: (b, 0, 0)),
        ),
        compiler_params=pltpu.CompilerParams(
            dimension_semantics=("parallel",),
            vmem_limit_bytes=vmem_limit),
    )(x, w_conv_k, w_mix_t, b_fused, gamma_k, beta_k)

    return out[:B] if b_pad != B else out


def local_propagation_ref(x, w_conv, b_conv, w_mix, b_mix, gamma, beta):
    """Pure-JAX reference matching the PyTorch module semantics."""
    B, N, C = x.shape
    xt = jnp.transpose(x, (0, 2, 1))                     # (B, C, N)
    xt_pad = jnp.pad(xt, ((0, 0), (0, 0), (1, 1)))
    w = w_conv.reshape(C, 3)                             # depthwise taps
    conv = (xt_pad[:, :, 0:N] * w[None, :, 0:1] +
            xt_pad[:, :, 1:N + 1] * w[None, :, 1:2] +
            xt_pad[:, :, 2:N + 2] * w[None, :, 2:3]) + b_conv[None, :, None]
    y = jnp.transpose(conv, (0, 2, 1))                   # (B, N, C)
    y = y @ w_mix.T + b_mix
    mean = jnp.mean(y, axis=-1, keepdims=True)
    var = jnp.mean((y - mean) ** 2, axis=-1, keepdims=True)
    return (y - mean) / jnp.sqrt(var + EPS) * gamma + beta


if __name__ == "__main__":
    # C = 128 keeps the channel axis exactly one lane group -> unmasked,
    # lane-dense loads/stores and a full-width MXU matmul.
    B, N, C = 2, 16, 128
    key = jax.random.PRNGKey(0)
    kx, k1, k2, k3, k4 = jax.random.split(key, 5)

    x = jax.random.normal(kx, (B, N, C), dtype=jnp.float32)

    # Deterministic parameter init (shapes match the PyTorch module).
    w_conv = jax.random.normal(k1, (C, 1, 3), dtype=jnp.float32) * 0.1   # Conv1d weight (C,1,K)
    b_conv = jax.random.normal(k2, (C,), dtype=jnp.float32) * 0.1        # Conv1d bias
    w_mix = jax.random.normal(k3, (C, C), dtype=jnp.float32) * 0.1       # Linear weight (out,in)
    b_mix = jax.random.normal(k4, (C,), dtype=jnp.float32) * 0.1         # Linear bias
    gamma = jnp.ones((C,), dtype=jnp.float32)                            # LayerNorm weight
    beta = jnp.zeros((C,), dtype=jnp.float32)                            # LayerNorm bias

    out = local_propagation(x, w_conv, b_conv, w_mix, b_mix, gamma, beta)
    out = jax.block_until_ready(out)

    ref = local_propagation_ref(x, w_conv, b_conv, w_mix, b_mix, gamma, beta)
    assert out.shape == (B, N, C)
    assert jnp.allclose(out, ref, atol=1e-4, rtol=1e-4), "mismatch vs reference"

    print("KERNEL_OK")
</pallas_src>

<mosaic_0001>
module attributes {stable_mosaic.version = 11 : i64} {
  func.func @local_propagation_kernel(%arg0: i32, %arg1: memref<2x16x128xf32, #tpu.memory_space<vmem>>, %arg2: memref<3x128xf32, #tpu.memory_space<vmem>>, %arg3: memref<128x128xf32, #tpu.memory_space<vmem>>, %arg4: memref<1x128xf32, #tpu.memory_space<vmem>>, %arg5: memref<1x128xf32, #tpu.memory_space<vmem>>, %arg6: memref<1x128xf32, #tpu.memory_space<vmem>>, %arg7: memref<2x16x128xf32, #tpu.memory_space<vmem>>) attributes {dimension_semantics = [#tpu.dimension_semantics<parallel>], iteration_bounds = array<i64: 1>, scalar_prefetch = 0 : i64, scratch_operands = 0 : i64, tpu.core_type = #tpu.core_type<tc>, window_params = [{transform_indices = @transform_0, window_bounds = array<i64: 2, 16, 128>}, {pipeline_mode = #tpu.pipeline_mode<synchronous>, transform_indices = @transform_1, window_bounds = array<i64: 3, 128>}, {pipeline_mode = #tpu.pipeline_mode<synchronous>, transform_indices = @transform_2, window_bounds = array<i64: 128, 128>}, {pipeline_mode = #tpu.pipeline_mode<synchronous>, transform_indices = @transform_3, window_bounds = array<i64: 1, 128>}, {pipeline_mode = #tpu.pipeline_mode<synchronous>, transform_indices = @transform_4, window_bounds = array<i64: 1, 128>}, {pipeline_mode = #tpu.pipeline_mode<synchronous>, transform_indices = @transform_5, window_bounds = array<i64: 1, 128>}, {transform_indices = @transform_6, window_bounds = array<i64: 2, 16, 128>}]} {
    %c0 = arith.constant 0 : index
    %c0_0 = arith.constant 0 : index
    %c0_1 = arith.constant 0 : index
    %0 = vector.load %arg1[%c0, %c0_0, %c0_1] : memref<2x16x128xf32, #tpu.memory_space<vmem>>, vector<2x16x128xf32>
    %1 = tpu.iota {dimensions = array<i32: 1>} : vector<2x16x128xi32>
    %2 = vector.shape_cast %0 : vector<2x16x128xf32> to vector<32x128xf32>
    %3 = vector.shape_cast %1 : vector<2x16x128xi32> to vector<32x128xi32>
    %c0_2 = arith.constant 0 : index
    %c0_3 = arith.constant 0 : index
    %4 = vector.load %arg2[%c0_2, %c0_3] : memref<3x128xf32, #tpu.memory_space<vmem>>, vector<1x128xf32>
    %c1 = arith.constant 1 : index
    %c0_4 = arith.constant 0 : index
    %5 = vector.load %arg2[%c1, %c0_4] : memref<3x128xf32, #tpu.memory_space<vmem>>, vector<1x128xf32>
    %c2 = arith.constant 2 : index
    %c0_5 = arith.constant 0 : index
    %6 = vector.load %arg2[%c2, %c0_5] : memref<3x128xf32, #tpu.memory_space<vmem>>, vector<1x128xf32>
    %c0_i32 = arith.constant 0 : i32
    %7 = vector.broadcast %c0_i32 : i32 to vector<32x128xi32>
    %8 = arith.cmpi eq, %3, %7 : vector<32x128xi32>
    %c1_i32 = arith.constant 1 : i32
    %9 = tpu.dynamic_rotate %2 by %c1_i32 dim 0 : vector<32x128xf32>, i32 -> vector<32x128xf32>
    %cst = arith.constant 0.000000e+00 : f32
    %10 = vector.broadcast %cst : f32 to vector<32x128xf32>
    %11 = arith.select %8, %10, %9 : vector<32x128xi1>, vector<32x128xf32>
    %c15_i32 = arith.constant 15 : i32
    %12 = vector.broadcast %c15_i32 : i32 to vector<32x128xi32>
    %13 = arith.cmpi eq, %3, %12 : vector<32x128xi32>
    %c31_i32 = arith.constant 31 : i32
    %14 = tpu.dynamic_rotate %2 by %c31_i32 dim 0 : vector<32x128xf32>, i32 -> vector<32x128xf32>
    %cst_6 = arith.constant 0.000000e+00 : f32
    %15 = vector.broadcast %cst_6 : f32 to vector<32x128xf32>
    %16 = arith.select %13, %15, %14 : vector<32x128xi1>, vector<32x128xf32>
    %17 = vector.broadcast %4 : vector<1x128xf32> to vector<32x128xf32>
    %18 = arith.mulf %11, %17 : vector<32x128xf32>
    %19 = vector.broadcast %5 : vector<1x128xf32> to vector<32x128xf32>
    %20 = arith.mulf %2, %19 : vector<32x128xf32>
    %21 = arith.addf %18, %20 : vector<32x128xf32>
    %22 = vector.broadcast %6 : vector<1x128xf32> to vector<32x128xf32>
    %23 = arith.mulf %16, %22 : vector<32x128xf32>
    %24 = arith.addf %21, %23 : vector<32x128xf32>
    %c0_7 = arith.constant 0 : index
    %c0_8 = arith.constant 0 : index
    %25 = vector.load %arg3[%c0_7, %c0_8] : memref<128x128xf32, #tpu.memory_space<vmem>>, vector<128x128xf32>
    %cst_9 = arith.constant dense<0.000000e+00> : vector<32x128xf32>
    %26 = tpu.matmul %24, %25, %cst_9 {dimension_numbers = #tpu.dot_dimension_numbers<[1], [0], [0], [1], [0, 0, 1, 1], [], []>} : vector<32x128xf32>, vector<128x128xf32>, vector<32x128xf32> -> vector<32x128xf32>
    %c0_10 = arith.constant 0 : index
    %c0_11 = arith.constant 0 : index
    %27 = vector.load %arg4[%c0_10, %c0_11] : memref<1x128xf32, #tpu.memory_space<vmem>>, vector<1x128xf32>
    %28 = vector.broadcast %27 : vector<1x128xf32> to vector<32x128xf32>
    %29 = arith.addf %26, %28 : vector<32x128xf32>
    %cst_12 = arith.constant dense<0.000000e+00> : vector<32xf32>
    %30 = vector.multi_reduction <add>, %29, %cst_12 [1] : vector<32x128xf32> to vector<32xf32>
    %31 = vector.shape_cast %30 : vector<32xf32> to vector<32x1xf32>
    %32 = arith.mulf %29, %29 : vector<32x128xf32>
    %cst_13 = arith.constant dense<0.000000e+00> : vector<32xf32>
    %33 = vector.multi_reduction <add>, %32, %cst_13 [1] : vector<32x128xf32> to vector<32xf32>
    %34 = vector.shape_cast %33 : vector<32xf32> to vector<32x1xf32>
    %cst_14 = arith.constant 7.812500e-03 : f32
    %35 = vector.broadcast %cst_14 : f32 to vector<32x1xf32>
    %36 = arith.mulf %31, %35 : vector<32x1xf32>
    %cst_15 = arith.constant 7.812500e-03 : f32
    %37 = vector.broadcast %cst_15 : f32 to vector<32x1xf32>
    %38 = arith.mulf %34, %37 : vector<32x1xf32>
    %39 = arith.mulf %36, %36 : vector<32x1xf32>
    %40 = arith.subf %38, %39 : vector<32x1xf32>
    %41 = vector.broadcast %36 : vector<32x1xf32> to vector<32x128xf32>
    %42 = arith.subf %29, %41 : vector<32x128xf32>
    %cst_16 = arith.constant 9.99999974E-6 : f32
    %43 = vector.broadcast %cst_16 : f32 to vector<32x1xf32>
    %44 = arith.addf %40, %43 : vector<32x1xf32>
    %45 = math.rsqrt %44 : vector<32x1xf32>
    %46 = vector.broadcast %45 : vector<32x1xf32> to vector<32x128xf32>
    %47 = arith.mulf %42, %46 : vector<32x128xf32>
    %c0_17 = arith.constant 0 : index
    %c0_18 = arith.constant 0 : index
    %48 = vector.load %arg5[%c0_17, %c0_18] : memref<1x128xf32, #tpu.memory_space<vmem>>, vector<1x128xf32>
    %49 = vector.broadcast %48 : vector<1x128xf32> to vector<32x128xf32>
    %50 = arith.mulf %47, %49 : vector<32x128xf32>
    %c0_19 = arith.constant 0 : index
    %c0_20 = arith.constant 0 : index
    %51 = vector.load %arg6[%c0_19, %c0_20] : memref<1x128xf32, #tpu.memory_space<vmem>>, vector<1x128xf32>
    %52 = vector.broadcast %51 : vector<1x128xf32> to vector<32x128xf32>
    %53 = arith.addf %50, %52 : vector<32x128xf32>
    %54 = vector.shape_cast %53 : vector<32x128xf32> to vector<2x16x128xf32>
    %c0_21 = arith.constant 0 : index
    %c0_22 = arith.constant 0 : index
    %c0_23 = arith.constant 0 : index
    %55 = vector.load %arg7[%c0_21, %c0_22, %c0_23] : memref<2x16x128xf32, #tpu.memory_space<vmem>>, vector<2x16x128xf32>
    tpu.vector_store %arg7[%c0_21, %c0_22, %c0_23], %54 {strides = array<i32>} : memref<2x16x128xf32, #tpu.memory_space<vmem>>, vector<2x16x128xf32>,
    return
  }
  func.func @transform_0(%arg0: i32) -> (i32, i32, i32) {
    %c0_i32 = arith.constant 0 : i32
    %c0_i32_0 = arith.constant 0 : i32
    %c0_i32_1 = arith.constant 0 : i32
    return %arg0, %c0_i32, %c0_i32_0 : i32, i32, i32
  }
  func.func @transform_1(%arg0: i32) -> (i32, i32) {
    %c0_i32 = arith.constant 0 : i32
    %c0_i32_0 = arith.constant 0 : i32
    %c0_i32_1 = arith.constant 0 : i32
    return %c0_i32, %c0_i32_0 : i32, i32
  }
  func.func @transform_2(%arg0: i32) -> (i32, i32) {
    %c0_i32 = arith.constant 0 : i32
    %c0_i32_0 = arith.constant 0 : i32
    %c0_i32_1 = arith.constant 0 : i32
    return %c0_i32, %c0_i32_0 : i32, i32
  }
  func.func @transform_3(%arg0: i32) -> (i32, i32) {
    %c0_i32 = arith.constant 0 : i32
    %c0_i32_0 = arith.constant 0 : i32
    %c0_i32_1 = arith.constant 0 : i32
    return %c0_i32, %c0_i32_0 : i32, i32
  }
  func.func @transform_4(%arg0: i32) -> (i32, i32) {
    %c0_i32 = arith.constant 0 : i32
    %c0_i32_0 = arith.constant 0 : i32
    %c0_i32_1 = arith.constant 0 : i32
    return %c0_i32, %c0_i32_0 : i32, i32
  }
  func.func @transform_5(%arg0: i32) -> (i32, i32) {
    %c0_i32 = arith.constant 0 : i32
    %c0_i32_0 = arith.constant 0 : i32
    %c0_i32_1 = arith.constant 0 : i32
    return %c0_i32, %c0_i32_0 : i32, i32
  }
  func.func @transform_6(%arg0: i32) -> (i32, i32, i32) {
    %c0_i32 = arith.constant 0 : i32
    %c0_i32_0 = arith.constant 0 : i32
    %c0_i32_1 = arith.constant 0 : i32
    return %arg0, %c0_i32, %c0_i32_0 : i32, i32, i32
  }
}

</mosaic_0001>

<llo_original>
// kernel: tpu_custom_call.1
$region0: #{tpu_custom_call.1}
  #allocation0 [shape = 'u32[]', space=smem, size = 0x4, offset = 0x4, fixed_abs, tag = 'smem constant byte address 0x4 - core index']
  #allocation1 [shape = 'u32[144,128]{1,0:T(1,128)}', space=vmem, size = 0x12000, scoped, tag = 'internal scratch']
  %s0 = inlined_call_operand.hbm [shape: f32[2,16,128], index: 0, kind: input, shape index: {}]
  %s1 = inlined_call_operand.hbm [shape: f32[3,128], index: 1, kind: input, shape index: {}]
  %s2 = inlined_call_operand.hbm [shape: f32[128,128], index: 2, kind: input, shape index: {}]
  %s3 = inlined_call_operand.vmem [shape: f32[1,128], index: 3, kind: input, shape index: {}]
  %s4 = inlined_call_operand.vmem [shape: f32[1,128], index: 4, kind: input, shape index: {}]
  %s5 = inlined_call_operand.vmem [shape: f32[1,128], index: 5, kind: input, shape index: {}]
  %s6 = inlined_call_operand.hbm [shape: f32[2,16,128], index: 6, kind: output, shape index: {}]
  %s7 = sld [smem:[#allocation0]]
  $region46: #{tpu_custom_call.1} parent=0
    _
  %s9 = ssub.s32 1, %s7
  %s10 = scalar_select 0, %s9, %s7
  $region1: #{tpu_custom_call.1} parent=0
    #allocation2 [shape = 'u8[16384]{0}', space=vmem, size = 0x4000, scoped, tag = 'input window, operand 0, single buffered']
    #allocation3 [shape = 's32[1]{0}', space=sflag, size = 0x4, scoped, tag = 'scoped memory for tpu_custom_call.1']
    #allocation4 [shape = 's32[1]{0}', space=sflag, size = 0x4, scoped, tag = 'scoped memory for tpu_custom_call.1']
    #allocation5 [shape = 'u8[2048]{0}', space=vmem, size = 0x800, scoped, tag = 'input window, operand 1, single buffered']
    #allocation6 [shape = 's32[1]{0}', space=sflag, size = 0x4, scoped, tag = 'scoped memory for tpu_custom_call.1']
    #allocation7 [shape = 'u8[65536]{0}', space=vmem, size = 0x10000, scoped, tag = 'input window, operand 2, single buffered']
    #allocation8 [shape = 'u8[16384]{0}', space=vmem, size = 0x4000, scoped, tag = 'output window, operand 0, single buffered']
    %11 = vsyncpa [#allocation3], 0
    %12 = vsyncpa [#allocation6], 0
    %13 = vsyncpa [#allocation4], 0
    // Predicated region
    $region2: #{tpu_custom_call.1} parent=1 // pred_check
      _
    $region3: #{tpu_custom_call.1} parent=1 // pred_check_branch
      %15 = sbr.rel (0) target = $region5
    $region4: #{tpu_custom_call.1} parent=1 // pred_region
      %s17 = ssub.s32 512, 512
      %18 = vsyncadd [#allocation3], %s17
      %s19 = sshll.u32 [#allocation2], 4
      %s20 = int_to_ptr.vmem [resolvable:$true] %s19
      %25 = dma.hbm_to_vmem [thread:$0]  %s0, 512, %s20, [#allocation3], 128, 128, 8
    $region5: #{tpu_custom_call.1} parent=1 // pred_fallthru
      _
    // Predicated region
    $region6: #{tpu_custom_call.1} parent=1 // pred_check
      _
    $region7: #{tpu_custom_call.1} parent=1 // pred_check_branch
      %27 = sbr.rel (0) target = $region9
    $region8: #{tpu_custom_call.1} parent=1 // pred_region
      %s29 = ssub.s32 64, 64
      %30 = vsyncadd [#allocation6], %s29
      %s32 = sshll.u32 [#allocation5], 4
      %s33 = int_to_ptr.vmem [resolvable:$true] %s32
      %35 = dma.hbm_to_vmem [thread:$0]  %s1, 64, %s33, [#allocation6]
    $region9: #{tpu_custom_call.1} parent=1 // pred_fallthru
      _
    // Predicated region
    $region10: #{tpu_custom_call.1} parent=1 // pred_check
      _
    $region11: #{tpu_custom_call.1} parent=1 // pred_check_branch
      %37 = sbr.rel (0) target = $region13
    $region12: #{tpu_custom_call.1} parent=1 // pred_region
      %s39 = ssub.s32 2048, 2048
      %40 = vsyncadd [#allocation6], %s39
      %s41 = sshll.u32 [#allocation7], 4
      %s42 = int_to_ptr.vmem [resolvable:$true] %s41
      %47 = dma.hbm_to_vmem [thread:$0]  %s2, 2048, %s42, [#allocation6], 128, 128, 8
    $region13: #{tpu_custom_call.1} parent=1 // pred_fallthru
      _
    // Predicated region
    $region14: #{tpu_custom_call.1} parent=1 // pred_check
      _
    $region15: #{tpu_custom_call.1} parent=1 // pred_check_branch
      %49 = sbr.rel (0) target = $region17
    $region16: #{tpu_custom_call.1} parent=1 // pred_region
      _
    $region17: #{tpu_custom_call.1} parent=1 // pred_fallthru
      _
    // Predicated region
    $region18: #{tpu_custom_call.1} parent=1 // pred_check
      _
    $region19: #{tpu_custom_call.1} parent=1 // pred_check_branch
      %51 = sbr.rel (0) target = $region21
    $region20: #{tpu_custom_call.1} parent=1 // pred_region
      _
    $region21: #{tpu_custom_call.1} parent=1 // pred_fallthru
      _
    // Predicated region
    $region22: #{tpu_custom_call.1} parent=1 // pred_check
      _
    $region23: #{tpu_custom_call.1} parent=1 // pred_check_branch
      %53 = sbr.rel (0) target = $region25
    $region24: #{tpu_custom_call.1} parent=1 // pred_region
      _
    $region25: #{tpu_custom_call.1} parent=1 // pred_fallthru
      _
    // Predicated region
    $region26: #{tpu_custom_call.1} parent=1 // pred_check
      _
    $region27: #{tpu_custom_call.1} parent=1 // pred_check_branch
      %55 = sbr.rel (0) target = $region29
    $region28: #{tpu_custom_call.1} parent=1 // pred_region
      %56 = dma.done [#allocation3], 512
    $region29: #{tpu_custom_call.1} parent=1 // pred_fallthru
      _
    // Predicated region
    $region30: #{tpu_custom_call.1} parent=1 // pred_check
      _
    $region31: #{tpu_custom_call.1} parent=1 // pred_check_branch
      %58 = sbr.rel (0) target = $region33
    $region32: #{tpu_custom_call.1} parent=1 // pred_region
      %59 = dma.done [#allocation6], 64
    $region33: #{tpu_custom_call.1} parent=1 // pred_fallthru
      _
    // Predicated region
    $region34: #{tpu_custom_call.1} parent=1 // pred_check
      _
    $region35: #{tpu_custom_call.1} parent=1 // pred_check_branch
      %61 = sbr.rel (0) target = $region37
    $region36: #{tpu_custom_call.1} parent=1 // pred_region
      %62 = dma.done [#allocation6], 2048
    $region37: #{tpu_custom_call.1} parent=1 // pred_fallthru
      _
    %v63 = vld [vmem:[#allocation2] sm:$0xff]
    %v64 = vld [vmem:[#allocation2 + $0x8] sm:$0xff]
    %v65 = vld [vmem:[#allocation2 + $0x10] sm:$0xff]
    %v66 = vld [vmem:[#allocation2 + $0x18] sm:$0xff]
    %v67 = vlaneseq
    %v68 = vshrl.u32 %v67, 7
    %v69 = vadd.s32 %v68, 8
    %v70 = vld [vmem:[#allocation5] sm:$0x1]
    %v71 = vld [vmem:[#allocation5 + $0x1] sm:$0x1]
    %v72 = vld [vmem:[#allocation5 + $0x2] sm:$0x1]
    %vm73 = vcmp.eq.s32.totalorder %v68, 0
    %vm74 = vcmp.eq.s32.totalorder %v69, 0
    %v75 = vrot.slane %v63, 7
    %v76 = vrot.slane %v64, 7
    %v77 = vrot.slane %v65, 7
    %v78 = vrot.slane %v66, 7
    %vm79 = vcmp.lt.s32.totalorder %v68, 1
    %v80 = vsel %vm79, %v77, %v78
    %v81 = vsel %vm79, %v76, %v77
    %v82 = vsel %vm79, %v75, %v76
    %v83 = vsel %vm79, %v78, %v75
    %v84 = vsel %vm73, 0.0, %v83
    %v85 = vsel %vm74, 0.0, %v82
    %v86 = vsel %vm73, 0.0, %v81
    %v87 = vsel %vm74, 0.0, %v80
    %vm88 = vcmp.eq.s32.totalorder %v68, 15
    %vm89 = vcmp.eq.s32.totalorder %v69, 15
    %v90 = vrot.slane %v63, 1
    %v91 = vrot.slane %v64, 1
    %v92 = vrot.slane %v65, 1
    %v93 = vrot.slane %v66, 1
    %vm94 = vcmp.lt.s32.totalorder %v68, 7
    %v95 = vsel %vm94, %v92, %v93
    %v96 = vsel %vm94, %v91, %v92
    %v97 = vsel %vm94, %v90, %v91
    %v98 = vsel %vm94, %v93, %v90
    %v99 = vsel %vm88, 0.0, %v97
    %v100 = vsel %vm89, 0.0, %v96
    %v101 = vsel %vm88, 0.0, %v95
    %v102 = vsel %vm89, 0.0, %v98
    %v103 = vlaneseq
    %v104 = vshrl.u32 %v103, 7
    %v105 = vsub.s32 0, %v104
    %v106 = vrot.slane %v70, %v105
    %v107 = vmul.f32 %v84, %v106
    %v108 = vmul.f32 %v85, %v106
    %v109 = vmul.f32 %v86, %v106
    %v110 = vmul.f32 %v87, %v106
    %v111 = vlaneseq
    %v112 = vshrl.u32 %v111, 7
    %v113 = vsub.s32 0, %v112
    %v114 = vrot.slane %v71, %v113
    %v115 = vmul.f32 %v63, %v114
    %v116 = vmul.f32 %v64, %v114
    %v117 = vmul.f32 %v65, %v114
    %v118 = vmul.f32 %v66, %v114
    %v119 = vadd.f32 %v107, %v115
    %v120 = vadd.f32 %v108, %v116
    %v121 = vadd.f32 %v109, %v117
    %v122 = vadd.f32 %v110, %v118
    %v123 = vlaneseq
    %v124 = vshrl.u32 %v123, 7
    %v125 = vsub.s32 0, %v124
    %v126 = vrot.slane %v72, %v125
    %v127 = vmul.f32 %v99, %v126
    %v128 = vmul.f32 %v100, %v126
    %v129 = vmul.f32 %v101, %v126
    %v130 = vmul.f32 %v102, %v126
    %v131 = vadd.f32 %v119, %v127
    %v132 = vadd.f32 %v120, %v128
    %v133 = vadd.f32 %v121, %v129
    %v134 = vadd.f32 %v122, %v130
    %v135 = vld [vmem:[#allocation7] sm:$0xff]
    %v136 = vld [vmem:[#allocation7 + $0x8] sm:$0xff]
    %v137 = vld [vmem:[#allocation7 + $0x10] sm:$0xff]
    %v138 = vld [vmem:[#allocation7 + $0x18] sm:$0xff]
    %v139 = vld [vmem:[#allocation7 + $0x20] sm:$0xff]
    %v140 = vld [vmem:[#allocation7 + $0x28] sm:$0xff]
    %v141 = vld [vmem:[#allocation7 + $0x30] sm:$0xff]
    %v142 = vld [vmem:[#allocation7 + $0x38] sm:$0xff]
    %v143 = vld [vmem:[#allocation7 + $0x40] sm:$0xff]
    %v144 = vld [vmem:[#allocation7 + $0x48] sm:$0xff]
    %v145 = vld [vmem:[#allocation7 + $0x50] sm:$0xff]
    %v146 = vld [vmem:[#allocation7 + $0x58] sm:$0xff]
    %v147 = vld [vmem:[#allocation7 + $0x60] sm:$0xff]
    %v148 = vld [vmem:[#allocation7 + $0x68] sm:$0xff]
    %v149 = vld [vmem:[#allocation7 + $0x70] sm:$0xff]
    %v150 = vld [vmem:[#allocation7 + $0x78] sm:$0xff]
    %v151 = vld [vmem:[%s3] sm:$0x1]
    %v153 = vlaneseq
    %v154 = vshrl.u32 %v153, 7
    %v155 = vsub.s32 0, %v154
    %v156 = vrot.slane %v151, %v155
    %158 = vmatprep.subr.mxu0 0.0
    %159 = vmatpush1.msra.mxu0 %v150
    %160 = vmatprep.subr.mxu0 0.0
    %161 = vmatpush1.msra.mxu0 %v149
    %162 = vmatprep.subr.mxu0 0.0
    %163 = vmatpush1.msra.mxu0 %v148
    %164 = vmatprep.subr.mxu0 0.0
    %165 = vmatpush1.msra.mxu0 %v147
    %166 = vmatprep.subr.mxu0 0.0
    %167 = vmatpush1.msra.mxu0 %v146
    %168 = vmatprep.subr.mxu0 0.0
    %169 = vmatpush1.msra.mxu0 %v145
    %170 = vmatprep.subr.mxu0 0.0
    %171 = vmatpush1.msra.mxu0 %v144
    %172 = vmatprep.subr.mxu0 0.0
    %173 = vmatpush1.msra.mxu0 %v143
    %174 = vmatprep.subr.mxu0 0.0
    %175 = vmatpush1.msra.mxu0 %v142
    %176 = vmatprep.subr.mxu0 0.0
    %177 = vmatpush1.msra.mxu0 %v141
    %178 = vmatprep.subr.mxu0 0.0
    %179 = vmatpush1.msra.mxu0 %v140
    %180 = vmatprep.subr.mxu0 0.0
    %181 = vmatpush1.msra.mxu0 %v139
    %182 = vmatprep.subr.mxu0 0.0
    %183 = vmatpush1.msra.mxu0 %v138
    %184 = vmatprep.subr.mxu0 0.0
    %185 = vmatpush1.msra.mxu0 %v137
    %186 = vmatprep.subr.mxu0 0.0
    %187 = vmatpush1.msra.mxu0 %v136
    %188 = vmatprep.subr.mxu0 0.0
    %189 = vmatpush1.msra.mxu0 %v135
    %190 = vmatprep.subr.mxu0 0.0
    %191 = vmatpush2.msra.mxu0 0.0
    %192 = vmatprep.subr.mxu0 0.0
    %193 = vmatpush2.msra.mxu0 0.0
    %194 = vmatprep.subr.mxu0 0.0
    %195 = vmatpush2.msra.mxu0 0.0
    %196 = vmatprep.subr.mxu0 0.0
    %197 = vmatpush2.msra.mxu0 0.0
    %198 = vmatprep.subr.mxu0 0.0
    %199 = vmatpush2.msra.mxu0 0.0
    %200 = vmatprep.subr.mxu0 0.0
    %201 = vmatpush2.msra.mxu0 0.0
    %202 = vmatprep.subr.mxu0 0.0
    %203 = vmatpush2.msra.mxu0 0.0
    %204 = vmatprep.subr.mxu0 0.0
    %205 = vmatpush2.msra.mxu0 0.0
    %206 = vmatprep.subr.mxu0 0.0
    %207 = vmatpush2.msra.mxu0 0.0
    %208 = vmatprep.subr.mxu0 0.0
    %209 = vmatpush2.msra.mxu0 0.0
    %210 = vmatprep.subr.mxu0 0.0
    %211 = vmatpush2.msra.mxu0 0.0
    %212 = vmatprep.subr.mxu0 0.0
    %213 = vmatpush2.msra.mxu0 0.0
    %214 = vmatprep.subr.mxu0 0.0
    %215 = vmatpush2.msra.mxu0 0.0
    %216 = vmatprep.subr.mxu0 0.0
    %217 = vmatpush2.msra.mxu0 0.0
    %218 = vmatprep.subr.mxu0 0.0
    %219 = vmatpush2.msra.mxu0 0.0
    %220 = vmatprep.subr.mxu0 0.0
    %221 = vmatpush2.msra.mxu0 0.0
    %222 = vmatprep.mubr.f32.mxu0 0.0
    %223 = vmatmul.mubr.f32.gmra.mxu0 %v131
    %v224 = vpop.f32.mrf.mxu0
    %v225 = vadd.f32 %v156, %v224
    %v226 = vpop.f32.mrf.mxu0
    %227 = vmatprep.mubr.f32.mxu0 0.0
    %228 = vmatmul.mubr.f32.gmra.mxu0 %v132
    %v229 = vpop.f32.mrf.mxu0
    %v230 = vadd.f32 %v156, %v229
    %v231 = vpop.f32.mrf.mxu0
    %232 = vmatprep.mubr.f32.mxu0 0.0
    %233 = vmatmul.mubr.f32.gmra.mxu0 %v133
    %v234 = vpop.f32.mrf.mxu0
    %v235 = vadd.f32 %v156, %v234
    %v236 = vpop.f32.mrf.mxu0
    %237 = vmatprep.mubr.f32.mxu0 0.0
    %238 = vmatmul.mubr.f32.gmra.mxu0 %v134
    %v239 = vpop.f32.mrf.mxu0
    %v240 = vadd.f32 %v156, %v239
    %v241 = vpop.f32.mrf.mxu0
    %242 = vdwg.mxu0
    %243 = vadd.xlane.f32.xlu0 %v225
    %v244 = vpop.xlane.xlu0 %243
    %245 = vadd.xlane.f32.xlu0 %v230
    %v246 = vpop.xlane.xlu0 %245
    %247 = vadd.xlane.f32.xlu0 %v235
    %v248 = vpop.xlane.xlu0 %247
    %249 = vadd.xlane.f32.xlu0 %v240
    %v250 = vpop.xlane.xlu0 %249
    %v251 = vmul.f32 %v225, %v225
    %v252 = vmul.f32 %v230, %v230
    %v253 = vmul.f32 %v235, %v235
    %v254 = vmul.f32 %v240, %v240
    %255 = vadd.xlane.f32.xlu0 %v251
    %v256 = vpop.xlane.xlu0 %255
    %257 = vadd.xlane.f32.xlu0 %v252
    %v258 = vpop.xlane.xlu0 %257
    %259 = vadd.xlane.f32.xlu0 %v253
    %v260 = vpop.xlane.xlu0 %259
    %261 = vadd.xlane.f32.xlu0 %v254
    %v262 = vpop.xlane.xlu0 %261
    %v263 = vmul.f32 %v244, 0.0078125
    %v264 = vmul.f32 %v246, 0.0078125
    %v265 = vmul.f32 %v248, 0.0078125
    %v266 = vmul.f32 %v250, 0.0078125
    %v267 = vmul.f32 %v256, 0.0078125
    %v268 = vmul.f32 %v258, 0.0078125
    %v269 = vmul.f32 %v260, 0.0078125
    %v270 = vmul.f32 %v262, 0.0078125
    %v271 = vmul.f32 %v263, %v263
    %v272 = vmul.f32 %v264, %v264
    %v273 = vmul.f32 %v265, %v265
    %v274 = vmul.f32 %v266, %v266
    %v275 = vsub.f32 %v267, %v271
    %v276 = vsub.f32 %v268, %v272
    %v277 = vsub.f32 %v269, %v273
    %v278 = vsub.f32 %v270, %v274
    %v279 = vsub.f32 %v225, %v263
    %v280 = vsub.f32 %v230, %v264
    %v281 = vsub.f32 %v235, %v265
    %v282 = vsub.f32 %v240, %v266
    %v283 = vadd.f32 %v275, 1e-05
    %v284 = vadd.f32 %v276, 1e-05
    %v285 = vadd.f32 %v277, 1e-05
    %v286 = vadd.f32 %v278, 1e-05
    %v287 = vrsqrt.pop %v283
    %v288 = vrsqrt.pop %v284
    %v289 = vrsqrt.pop %v285
    %v290 = vrsqrt.pop %v286
    %v291 = vmul.f32 %v279, %v287
    %v292 = vmul.f32 %v280, %v288
    %v293 = vmul.f32 %v281, %v289
    %v294 = vmul.f32 %v282, %v290
    %v295 = vld [vmem:[%s4] sm:$0x1]
    %v297 = vlaneseq
    %v298 = vshrl.u32 %v297, 7
    %v299 = vsub.s32 0, %v298
    %v300 = vrot.slane %v295, %v299
    %v302 = vmul.f32 %v291, %v300
    %v303 = vmul.f32 %v292, %v300
    %v304 = vmul.f32 %v293, %v300
    %v305 = vmul.f32 %v294, %v300
    %v306 = vld [vmem:[%s5] sm:$0x1]
    %v308 = vlaneseq
    %v309 = vshrl.u32 %v308, 7
    %v310 = vsub.s32 0, %v309
    %v311 = vrot.slane %v306, %v310
    %v313 = vadd.f32 %v302, %v311
    %v314 = vadd.f32 %v303, %v311
    %v315 = vadd.f32 %v304, %v311
    %v316 = vadd.f32 %v305, %v311
    %317 = vst [vmem:[#allocation8] sm:$0xff] %v313
    %318 = vst [vmem:[#allocation8 + $0x8] sm:$0xff] %v314
    %319 = vst [vmem:[#allocation8 + $0x10] sm:$0xff] %v315
    %320 = vst [vmem:[#allocation8 + $0x18] sm:$0xff] %v316
    // Predicated region
    $region38: #{tpu_custom_call.1} parent=1 // pred_check
      _
    $region39: #{tpu_custom_call.1} parent=1 // pred_check_branch
      %322 = sbr.rel (0) target = $region41
    $region40: #{tpu_custom_call.1} parent=1 // pred_region
      %s324 = ssub.s32 512, 512
      %325 = vsyncadd [#allocation4], %s324
      %s326 = sshll.u32 [#allocation8], 4
      %s327 = int_to_ptr.vmem [resolvable:$true] %s326
      %332 = dma.vmem_to_hbm [thread:$0]  %s327, 512, %s6, [#allocation4], 128, 128, 8
    $region41: #{tpu_custom_call.1} parent=1 // pred_fallthru
      _
    // Predicated region
    $region42: #{tpu_custom_call.1} parent=1 // pred_check
      _
    $region43: #{tpu_custom_call.1} parent=1 // pred_check_branch
      %334 = sbr.rel (0) target = $region45
    $region44: #{tpu_custom_call.1} parent=1 // pred_region
      %335 = dma.done [#allocation4], 512
    $region45: #{tpu_custom_call.1} parent=1 // pred_fallthru
      _
    %336 = vsyncpa [#allocation3], 1
    %337 = vsyncpa [#allocation6], 1
    %338 = vsyncpa [#allocation4], 1

</llo_original>
